<compile_context>
chip_gen: v7x
topology: tpu7x:2x2x1
jax: 0.10.0
libtpu: 0.0.40
codegen_flags: <defaults>
</compile_context>

<pallas_src>
import functools

import jax
import jax.numpy as jnp
from jax.experimental import pallas as pl
from jax.experimental.pallas import tpu as pltpu


def _round_up(a, b):
    return (a + b - 1) // b * b


def _residual_block_kernel(x_ref, wd_ref, bd_ref, w1_ref, b1_ref,
                           res_ref, out_ref, xext_ref, *,
                           C, K, dilation, tT, halo, matmul_dtype):
    """One (batch, time-tile) grid step.

    x_ref    : (1, C, tT)       raw input tile (f32)
    wd_ref   : (2C, K*C)        dilated conv weight, column block k == tap k
    bd_ref   : (2C, 1)          dilated conv bias (f32)
    w1_ref   : (C, C)           1x1 conv weight
    b1_ref   : (C, 1)           1x1 conv bias (f32)
    res_ref  : (1, C, tT)       residual output
    out_ref  : (1, C, tT)       skip (1x1 conv) output
    xext_ref : (C, halo + tT)   VMEM scratch: [carried causal halo | current
                                tile]; persists across the sequential time axis.
    """
    t = pl.program_id(1)

    # Start of a new batch row: the causal left-pad is all zeros.
    @pl.when(t == 0)
    def _():
        xext_ref[:, :halo] = jnp.zeros((C, halo), xext_ref.dtype)

    # Stage the current tile next to the carried halo.  Both `halo` and `tT`
    # are multiples of 128, so this store is fully lane-aligned.
    xext_ref[:, halo:] = x_ref[0].astype(matmul_dtype)

    # Causal dilated conv.  Output column j needs x[j - (K-1-k)*dilation] for
    # tap k, i.e. the lane window starting at (halo - shift) in the extended
    # buffer.  Accumulate K thin matmuls in f32 (MXU has ample slack).
    acc = bd_ref[...] + jnp.dot(wd_ref[:, (K - 1) * C:], xext_ref[:, halo:],
                                preferred_element_type=jnp.float32)
    for k in range(K - 1):                        # static unroll; shifts > 0
        shift = (K - 1 - k) * dilation            # 0 < shift <= halo <= tT
        off = halo - shift
        acc = acc + jnp.dot(wd_ref[:, k * C:(k + 1) * C],
                            xext_ref[:, off:off + tT],
                            preferred_element_type=jnp.float32)

    # Gated activation (f32 elementwise; tanh/sigmoid run on the EUP).
    gated = jnp.tanh(acc[:C, :]) * jax.nn.sigmoid(acc[C:, :])

    # 1x1 conv (pointwise channel mix) + bias.
    y = jnp.dot(w1_ref[...], gated.astype(matmul_dtype),
                preferred_element_type=jnp.float32) + b1_ref[...]
    # TODO(synk): dropout omitted (identity in eval/inference mode).

    out_ref[0] = y.astype(out_ref.dtype)
    res_ref[0] = (x_ref[0] + y).astype(res_ref.dtype)    # f32 x: bit-exact

    # Carry the tail of this tile as the next step's causal halo.
    # Aligned VMEM self-copy; source [tT, tT+halo) and dest [0, halo) are
    # disjoint because tT >= halo.
    xext_ref[:, :halo] = xext_ref[:, tT:]


def residual_block(x, w_dil, b_dil, w_1x1, b_1x1, *, kernel_size, dilation,
                   time_tile=1024, matmul_dtype=jnp.bfloat16):
    """x: (B, C, T) float32.  Returns (residual, out), both (B, C, T)."""
    B, C, T = x.shape
    K = kernel_size
    pad = (K - 1) * dilation

    # Lane-dense time tile (multiple of 128).  The carried-halo scheme needs
    # pad <= tT, so bump the tile for very large dilations.
    # TODO(synk): dilations whose pad exceeds a practical tile size would need
    # a multi-tile halo; not required for typical WaveNet configurations.
    lane = 128
    halo = _round_up(max(pad, 1), lane)
    tT = max(_round_up(min(time_tile, T), lane), halo)
    n_t = pl.cdiv(T, tT)

    # Weight layout: (2C, K*C), column block k == tap k of the dilated conv.
    # Constant index_maps -> DMA'd once, VMEM-resident across the whole grid.
    w2 = jnp.transpose(w_dil, (0, 2, 1)).reshape(2 * C, K * C).astype(matmul_dtype)
    w1 = w_1x1.reshape(C, C).astype(matmul_dtype)
    bd = b_dil.reshape(2 * C, 1).astype(jnp.float32)
    b1 = b_1x1.reshape(C, 1).astype(jnp.float32)

    kernel = functools.partial(_residual_block_kernel, C=C, K=K,
                               dilation=dilation, tT=tT, halo=halo,
                               matmul_dtype=matmul_dtype)

    # Size vmem_limit_bytes from the actual per-step footprint (double-buffered
    # blocks + intermediates) instead of hard-coding it.
    esize = jnp.dtype(matmul_dtype).itemsize
    blk = C * tT * 4
    est = (2 * blk                          # input tile, double buffered
           + 2 * 2 * blk                    # two f32 outputs, double buffered
           + C * (tT + halo) * esize        # extended-tile scratch
           + 2 * blk                        # acc (2C, tT) f32
           + 4 * blk                        # gated / y / cast temps headroom
           + (2 * C * K * C + C * C) * esize + 3 * C * 4)
    vmem_limit = int(min(96 * 1024 * 1024, max(32 * 1024 * 1024, 2 * est)))

    grid = (B, n_t)

    res, out = pl.pallas_call(
        kernel,
        grid=grid,
        in_specs=[
            # Raw activations: tiled over (batch, time); time is the lane axis.
            pl.BlockSpec((1, C, tT), lambda b, t: (b, 0, t)),
            # Weights / biases: constant index_map -> VMEM-resident.
            pl.BlockSpec((2 * C, K * C), lambda b, t: (0, 0)),
            pl.BlockSpec((2 * C, 1), lambda b, t: (0, 0)),
            pl.BlockSpec((C, C), lambda b, t: (0, 0)),
            pl.BlockSpec((C, 1), lambda b, t: (0, 0)),
        ],
        out_specs=[
            pl.BlockSpec((1, C, tT), lambda b, t: (b, 0, t)),
            pl.BlockSpec((1, C, tT), lambda b, t: (b, 0, t)),
        ],
        # Logical (B, C, T) outputs: Pallas masks the ragged last time block,
        # so no post-kernel slices / extra output copies.
        out_shape=(
            jax.ShapeDtypeStruct((B, C, T), x.dtype),
            jax.ShapeDtypeStruct((B, C, T), x.dtype),
        ),
        scratch_shapes=[pltpu.VMEM((C, halo + tT), matmul_dtype)],
        compiler_params=pltpu.CompilerParams(
            # Batch rows are independent ("parallel", megacore-splittable on
            # v7x); time must run in order ("arbitrary") for the carried halo.
            dimension_semantics=("parallel", "arbitrary"),
            vmem_limit_bytes=vmem_limit),
    )(x, w2, bd, w1, b1)

    return res, out


def _reference(x, w_dil, b_dil, w_1x1, b_1x1, *, kernel_size, dilation):
    """Pure-JAX reference mirroring the PyTorch module (eval mode)."""
    pad = (kernel_size - 1) * dilation
    y = jax.lax.conv_general_dilated(
        x, w_dil, window_strides=(1,), padding=[(pad, pad)],
        rhs_dilation=(dilation,),
        dimension_numbers=('NCH', 'OIH', 'NCH'))
    if pad != 0:
        y = y[:, :, :-pad]
    y = y + b_dil[None, :, None]
    C = x.shape[1]
    f, g = y[:, :C, :], y[:, C:, :]
    gated = jnp.tanh(f) * jax.nn.sigmoid(g)
    out = jnp.einsum('oc,bct->bot', w_1x1.reshape(C, C), gated) \
        + b_1x1[None, :, None]
    return x + out, out


def _make_params(key, C, kernel_size):
    kw1, kb1, kw2, kb2 = jax.random.split(key, 4)
    bound_d = 1.0 / (C * kernel_size) ** 0.5
    w_dil = jax.random.uniform(kw1, (2 * C, C, kernel_size), jnp.float32,
                               -bound_d, bound_d)
    b_dil = jax.random.uniform(kb1, (2 * C,), jnp.float32, -bound_d, bound_d)
    bound_1 = 1.0 / C ** 0.5
    w_1x1 = jax.random.uniform(kw2, (C, C), jnp.float32, -bound_1, bound_1)
    b_1x1 = jax.random.uniform(kb2, (C,), jnp.float32, -bound_1, bound_1)
    return w_dil, b_dil, w_1x1, b_1x1


if __name__ == "__main__":
    key = jax.random.PRNGKey(0)
    k1, k2, k3, kp1, kp2, kp3 = jax.random.split(key, 6)

    # --- config 1: tiny, single (partial) time tile -------------------------
    B, C, T = 2, 4, 16
    kernel_size, dilation = 3, 2
    x = jax.random.normal(k1, (B, C, T), jnp.float32)
    w_dil, b_dil, w_1x1, b_1x1 = _make_params(kp1, C, kernel_size)

    res_ref, out_ref = _reference(x, w_dil, b_dil, w_1x1, b_1x1,
                                  kernel_size=kernel_size, dilation=dilation)

    # f32 matmul path: tight check.
    res, out = residual_block(x, w_dil, b_dil, w_1x1, b_1x1,
                              kernel_size=kernel_size, dilation=dilation,
                              matmul_dtype=jnp.float32)
    jax.block_until_ready((res, out))
    assert res.shape == (B, C, T) and out.shape == (B, C, T)
    assert jnp.allclose(res, res_ref, atol=1e-4, rtol=1e-4)
    assert jnp.allclose(out, out_ref, atol=1e-4, rtol=1e-4)

    # bf16 matmul path (default): loose check (bf16 operand rounding).
    res_b, out_b = residual_block(x, w_dil, b_dil, w_1x1, b_1x1,
                                  kernel_size=kernel_size, dilation=dilation)
    jax.block_until_ready((res_b, out_b))
    assert jnp.allclose(res_b, res_ref, atol=5e-2, rtol=5e-2)
    assert jnp.allclose(out_b, out_ref, atol=5e-2, rtol=5e-2)

    # --- config 2: multiple time tiles + ragged tail + carried halo ---------
    B2, C2, T2 = 2, 8, 200
    ks2, dil2 = 2, 4
    x2 = jax.random.normal(k2, (B2, C2, T2), jnp.float32)
    w_dil2, b_dil2, w_1x12, b_1x12 = _make_params(kp2, C2, ks2)

    res2, out2 = residual_block(x2, w_dil2, b_dil2, w_1x12, b_1x12,
                                kernel_size=ks2, dilation=dil2,
                                time_tile=128)
    jax.block_until_ready((res2, out2))
    res2_ref, out2_ref = _reference(x2, w_dil2, b_dil2, w_1x12, b_1x12,
                                    kernel_size=ks2, dilation=dil2)
    assert jnp.allclose(res2, res2_ref, atol=5e-2, rtol=5e-2)
    assert jnp.allclose(out2, out2_ref, atol=5e-2, rtol=5e-2)

    # --- config 3: large dilation, halo straddles several tile boundaries ---
    B3, C3, T3 = 1, 8, 424
    ks3, dil3 = 3, 32                  # pad = 64 <= tT = 128
    x3 = jax.random.normal(k3, (B3, C3, T3), jnp.float32)
    w_dil3, b_dil3, w_1x13, b_1x13 = _make_params(kp3, C3, ks3)

    res3, out3 = residual_block(x3, w_dil3, b_dil3, w_1x13, b_1x13,
                                kernel_size=ks3, dilation=dil3,
                                time_tile=128, matmul_dtype=jnp.float32)
    jax.block_until_ready((res3, out3))
    res3_ref, out3_ref = _reference(x3, w_dil3, b_dil3, w_1x13, b_1x13,
                                    kernel_size=ks3, dilation=dil3)
    assert jnp.allclose(res3, res3_ref, atol=1e-4, rtol=1e-4)
    assert jnp.allclose(out3, out3_ref, atol=1e-4, rtol=1e-4)

    print("KERNEL_OK")
</pallas_src>

<mosaic_0001>
module attributes {stable_mosaic.version = 11 : i64} {
  func.func @_residual_block_kernel(%arg0: i32, %arg1: i32, %arg2: memref<1x4x128xf32, #tpu.memory_space<vmem>>, %arg3: memref<8x12xf32, #tpu.memory_space<vmem>>, %arg4: memref<8x1xf32, #tpu.memory_space<vmem>>, %arg5: memref<4x4xf32, #tpu.memory_space<vmem>>, %arg6: memref<4x1xf32, #tpu.memory_space<vmem>>, %arg7: memref<1x4x128xf32, #tpu.memory_space<vmem>>, %arg8: memref<1x4x128xf32, #tpu.memory_space<vmem>>, %arg9: memref<4x256xf32, #tpu.memory_space<vmem>>) attributes {dimension_semantics = [#tpu.dimension_semantics<parallel>, #tpu.dimension_semantics<arbitrary>], iteration_bounds = array<i64: 2, 1>, scalar_prefetch = 0 : i64, scratch_operands = 1 : i64, tpu.core_type = #tpu.core_type<tc>, window_params = [{transform_indices = @transform_0, window_bounds = array<i64: 1, 4, 128>}, {pipeline_mode = #tpu.pipeline_mode<synchronous>, transform_indices = @transform_1, window_bounds = array<i64: 8, 12>}, {pipeline_mode = #tpu.pipeline_mode<synchronous>, transform_indices = @transform_2, window_bounds = array<i64: 8, 1>}, {pipeline_mode = #tpu.pipeline_mode<synchronous>, transform_indices = @transform_3, window_bounds = array<i64: 4, 4>}, {pipeline_mode = #tpu.pipeline_mode<synchronous>, transform_indices = @transform_4, window_bounds = array<i64: 4, 1>}, {transform_indices = @transform_5, window_bounds = array<i64: 1, 4, 128>}, {transform_indices = @transform_6, window_bounds = array<i64: 1, 4, 128>}]} {
    %c0_i32 = arith.constant 0 : i32
    %0 = arith.cmpi eq, %arg1, %c0_i32 : i32
    %1 = arith.extui %0 : i1 to i32
    %c0_i32_0 = arith.constant 0 : i32
    %2 = arith.cmpi ne, %1, %c0_i32_0 : i32
    scf.if %2 {
      %cst_35 = arith.constant 0.000000e+00 : f32
      %45 = vector.broadcast %cst_35 : f32 to vector<4x128xf32>
      %c0_36 = arith.constant 0 : index
      %c0_37 = arith.constant 0 : index
      %46 = vector.load %arg9[%c0_36, %c0_37] : memref<4x256xf32, #tpu.memory_space<vmem>>, vector<4x128xf32>
      tpu.vector_store %arg9[%c0_36, %c0_37], %45 {strides = array<i32>} : memref<4x256xf32, #tpu.memory_space<vmem>>, vector<4x128xf32>,
    } else {
    }
    %c0 = arith.constant 0 : index
    %c0_1 = arith.constant 0 : index
    %c0_2 = arith.constant 0 : index
    %3 = vector.load %arg2[%c0, %c0_1, %c0_2] : memref<1x4x128xf32, #tpu.memory_space<vmem>>, vector<1x4x128xf32>
    %4 = vector.shape_cast %3 : vector<1x4x128xf32> to vector<4x128xf32>
    %c0_3 = arith.constant 0 : index
    %c128 = arith.constant 128 : index
    %5 = vector.load %arg9[%c0_3, %c128] : memref<4x256xf32, #tpu.memory_space<vmem>>, vector<4x128xf32>
    tpu.vector_store %arg9[%c0_3, %c128], %4 {strides = array<i32>} : memref<4x256xf32, #tpu.memory_space<vmem>>, vector<4x128xf32>,
    %c0_4 = arith.constant 0 : index
    %c0_5 = arith.constant 0 : index
    %6 = vector.load %arg4[%c0_4, %c0_5] : memref<8x1xf32, #tpu.memory_space<vmem>>, vector<8x1xf32>
    %c0_6 = arith.constant 0 : index
    %c8 = arith.constant 8 : index
    %7 = vector.load %arg3[%c0_6, %c8] : memref<8x12xf32, #tpu.memory_space<vmem>>, vector<8x4xf32>
    %c0_7 = arith.constant 0 : index
    %c128_8 = arith.constant 128 : index
    %8 = vector.load %arg9[%c0_7, %c128_8] : memref<4x256xf32, #tpu.memory_space<vmem>>, vector<4x128xf32>
    %cst = arith.constant dense<0.000000e+00> : vector<8x128xf32>
    %9 = tpu.matmul %7, %8, %cst {dimension_numbers = #tpu.dot_dimension_numbers<[1], [0], [0], [1], [0, 0, 1, 1], [], []>} : vector<8x4xf32>, vector<4x128xf32>, vector<8x128xf32> -> vector<8x128xf32>
    %10 = vector.broadcast %6 : vector<8x1xf32> to vector<8x128xf32>
    %11 = arith.addf %10, %9 : vector<8x128xf32>
    %c0_9 = arith.constant 0 : index
    %c0_10 = arith.constant 0 : index
    %12 = vector.load %arg3[%c0_9, %c0_10] : memref<8x12xf32, #tpu.memory_space<vmem>>, vector<8x4xf32>
    %c0_11 = arith.constant 0 : index
    %c124 = arith.constant 124 : index
    %13 = vector.load %arg9[%c0_11, %c124] : memref<4x256xf32, #tpu.memory_space<vmem>>, vector<4x128xf32>
    %cst_12 = arith.constant dense<0.000000e+00> : vector<8x128xf32>
    %14 = tpu.matmul %12, %13, %cst_12 {dimension_numbers = #tpu.dot_dimension_numbers<[1], [0], [0], [1], [0, 0, 1, 1], [], []>} : vector<8x4xf32>, vector<4x128xf32>, vector<8x128xf32> -> vector<8x128xf32>
    %15 = arith.addf %11, %14 : vector<8x128xf32>
    %c0_13 = arith.constant 0 : index
    %c4 = arith.constant 4 : index
    %16 = vector.load %arg3[%c0_13, %c4] : memref<8x12xf32, #tpu.memory_space<vmem>>, vector<8x4xf32>
    %c0_14 = arith.constant 0 : index
    %c126 = arith.constant 126 : index
    %17 = vector.load %arg9[%c0_14, %c126] : memref<4x256xf32, #tpu.memory_space<vmem>>, vector<4x128xf32>
    %cst_15 = arith.constant dense<0.000000e+00> : vector<8x128xf32>
    %18 = tpu.matmul %16, %17, %cst_15 {dimension_numbers = #tpu.dot_dimension_numbers<[1], [0], [0], [1], [0, 0, 1, 1], [], []>} : vector<8x4xf32>, vector<4x128xf32>, vector<8x128xf32> -> vector<8x128xf32>
    %19 = arith.addf %15, %18 : vector<8x128xf32>
    %20 = vector.extract_strided_slice %19 {offsets = [0, 0], sizes = [4, 128], strides = [1, 1]} : vector<8x128xf32> to vector<4x128xf32>
    %21 = math.tanh %20 : vector<4x128xf32>
    %22 = vector.extract_strided_slice %19 {offsets = [4, 0], sizes = [4, 128], strides = [1, 1]} : vector<8x128xf32> to vector<4x128xf32>
    %23 = arith.negf %22 : vector<4x128xf32>
    %24 = math.exp %23 : vector<4x128xf32>
    %cst_16 = arith.constant 1.000000e+00 : f32
    %25 = vector.broadcast %cst_16 : f32 to vector<4x128xf32>
    %26 = arith.addf %25, %24 : vector<4x128xf32>
    %27 = arith.divf %25, %26 : vector<4x128xf32>
    %28 = arith.mulf %21, %27 : vector<4x128xf32>
    %c0_17 = arith.constant 0 : index
    %c0_18 = arith.constant 0 : index
    %29 = vector.load %arg5[%c0_17, %c0_18] : memref<4x4xf32, #tpu.memory_space<vmem>>, vector<4x4xf32>
    %cst_19 = arith.constant dense<0.000000e+00> : vector<4x128xf32>
    %30 = tpu.matmul %29, %28, %cst_19 {dimension_numbers = #tpu.dot_dimension_numbers<[1], [0], [0], [1], [0, 0, 1, 1], [], []>} : vector<4x4xf32>, vector<4x128xf32>, vector<4x128xf32> -> vector<4x128xf32>
    %c0_20 = arith.constant 0 : index
    %c0_21 = arith.constant 0 : index
    %31 = vector.load %arg6[%c0_20, %c0_21] : memref<4x1xf32, #tpu.memory_space<vmem>>, vector<4x1xf32>
    %32 = vector.broadcast %31 : vector<4x1xf32> to vector<4x128xf32>
    %33 = arith.addf %30, %32 : vector<4x128xf32>
    %c0_22 = arith.constant 0 : index
    %c0_23 = arith.constant 0 : index
    %c0_24 = arith.constant 0 : index
    %34 = vector.load %arg8[%c0_22, %c0_23, %c0_24] : memref<1x4x128xf32, #tpu.memory_space<vmem>>, vector<1x4x128xf32>
    %35 = vector.shape_cast %34 : vector<1x4x128xf32> to vector<4x128xf32>
    %36 = vector.shape_cast %33 : vector<4x128xf32> to vector<1x4x128xf32>
    tpu.vector_store %arg8[%c0_22, %c0_23, %c0_24], %36 {strides = array<i32>} : memref<1x4x128xf32, #tpu.memory_space<vmem>>, vector<1x4x128xf32>,
    %c0_25 = arith.constant 0 : index
    %c0_26 = arith.constant 0 : index
    %c0_27 = arith.constant 0 : index
    %37 = vector.load %arg2[%c0_25, %c0_26, %c0_27] : memref<1x4x128xf32, #tpu.memory_space<vmem>>, vector<1x4x128xf32>
    %38 = vector.shape_cast %37 : vector<1x4x128xf32> to vector<4x128xf32>
    %39 = arith.addf %38, %33 : vector<4x128xf32>
    %c0_28 = arith.constant 0 : index
    %c0_29 = arith.constant 0 : index
    %c0_30 = arith.constant 0 : index
    %40 = vector.load %arg7[%c0_28, %c0_29, %c0_30] : memref<1x4x128xf32, #tpu.memory_space<vmem>>, vector<1x4x128xf32>
    %41 = vector.shape_cast %40 : vector<1x4x128xf32> to vector<4x128xf32>
    %42 = vector.shape_cast %39 : vector<4x128xf32> to vector<1x4x128xf32>
    tpu.vector_store %arg7[%c0_28, %c0_29, %c0_30], %42 {strides = array<i32>} : memref<1x4x128xf32, #tpu.memory_space<vmem>>, vector<1x4x128xf32>,
    %c0_31 = arith.constant 0 : index
    %c128_32 = arith.constant 128 : index
    %43 = vector.load %arg9[%c0_31, %c128_32] : memref<4x256xf32, #tpu.memory_space<vmem>>, vector<4x128xf32>
    %c0_33 = arith.constant 0 : index
    %c0_34 = arith.constant 0 : index
    %44 = vector.load %arg9[%c0_33, %c0_34] : memref<4x256xf32, #tpu.memory_space<vmem>>, vector<4x128xf32>
    tpu.vector_store %arg9[%c0_33, %c0_34], %43 {strides = array<i32>} : memref<4x256xf32, #tpu.memory_space<vmem>>, vector<4x128xf32>,
    return
  }
  func.func @transform_0(%arg0: i32, %arg1: i32) -> (i32, i32, i32) {
    %c0_i32 = arith.constant 0 : i32
    %c0_i32_0 = arith.constant 0 : i32
    return %arg0, %c0_i32, %arg1 : i32, i32, i32
  }
  func.func @transform_1(%arg0: i32, %arg1: i32) -> (i32, i32) {
    %c0_i32 = arith.constant 0 : i32
    %c0_i32_0 = arith.constant 0 : i32
    %c0_i32_1 = arith.constant 0 : i32
    return %c0_i32, %c0_i32_0 : i32, i32
  }
  func.func @transform_2(%arg0: i32, %arg1: i32) -> (i32, i32) {
    %c0_i32 = arith.constant 0 : i32
    %c0_i32_0 = arith.constant 0 : i32
    %c0_i32_1 = arith.constant 0 : i32
    return %c0_i32, %c0_i32_0 : i32, i32
  }
  func.func @transform_3(%arg0: i32, %arg1: i32) -> (i32, i32) {
    %c0_i32 = arith.constant 0 : i32
    %c0_i32_0 = arith.constant 0 : i32
    %c0_i32_1 = arith.constant 0 : i32
    return %c0_i32, %c0_i32_0 : i32, i32
  }
  func.func @transform_4(%arg0: i32, %arg1: i32) -> (i32, i32) {
    %c0_i32 = arith.constant 0 : i32
    %c0_i32_0 = arith.constant 0 : i32
    %c0_i32_1 = arith.constant 0 : i32
    return %c0_i32, %c0_i32_0 : i32, i32
  }
  func.func @transform_5(%arg0: i32, %arg1: i32) -> (i32, i32, i32) {
    %c0_i32 = arith.constant 0 : i32
    %c0_i32_0 = arith.constant 0 : i32
    return %arg0, %c0_i32, %arg1 : i32, i32, i32
  }
  func.func @transform_6(%arg0: i32, %arg1: i32) -> (i32, i32, i32) {
    %c0_i32 = arith.constant 0 : i32
    %c0_i32_0 = arith.constant 0 : i32
    return %arg0, %c0_i32, %arg1 : i32, i32, i32
  }
}

</mosaic_0001>

<llo_original>
// kernel: tpu_custom_call.1
$region0: #{tpu_custom_call.1}
  #allocation0 [shape = 'u32[]', space=smem, size = 0x4, offset = 0x4, fixed_abs, tag = 'smem constant byte address 0x4 - core index']
  #allocation1 [shape = 'u32[144,128]{1,0:T(1,128)}', space=vmem, size = 0x12000, scoped, tag = 'internal scratch']
  #allocation2 [shape = 'f32[4,256]{1,0:T(4,128)}', space=vmem, size = 0x1000, scoped, tag = 'scratch operand']
  %s0 = inlined_call_operand.vmem [shape: f32[2,4,16], index: 0, kind: input, shape index: {}]
  %s1 = inlined_call_operand.vmem [shape: f32[8,12], index: 1, kind: input, shape index: {}]
  %s2 = inlined_call_operand.vmem [shape: f32[8,1], index: 2, kind: input, shape index: {}]
  %s3 = inlined_call_operand.vmem [shape: f32[4,4], index: 3, kind: input, shape index: {}]
  %s4 = inlined_call_operand.vmem [shape: f32[4,1], index: 4, kind: input, shape index: {}]
  %s5 = inlined_call_operand.hbm [shape: f32[2,4,16], index: 5, kind: output, shape index: {0}]
  %s6 = inlined_call_operand.hbm [shape: f32[2,4,16], index: 6, kind: output, shape index: {1}]
  %7 = xla_tuple %s5, %s6
  %s8 = sld [smem:[#allocation0]]
  $region65: #{tpu_custom_call.1} parent=0
    _
  %s10 = ssub.s32 1, %s8
  %s11 = scalar_select 0, %s10, %s8
  $region1: #{tpu_custom_call.1} parent=0
    #allocation3 [shape = 'u8[4096]{0}', space=vmem, size = 0x1000, scoped, tag = 'output window, operand 0']
    #allocation4 [shape = 's32[2]{0}', space=sflag, size = 0x8, scoped, tag = 'scoped memory for tpu_custom_call.1']
    #allocation5 [shape = 'u8[4096]{0}', space=vmem, size = 0x1000, scoped, tag = 'output window, operand 1']
    #allocation6 [shape = 's32[2]{0}', space=sflag, size = 0x8, scoped, tag = 'scoped memory for tpu_custom_call.1']
    %12 = vsyncpa [#allocation4], 0
    %s13 = scalar_lea.sflag [#allocation4], 1
    %14 = vsyncpa %s13, 0
    %15 = vsyncpa [#allocation6], 0
    %s16 = scalar_lea.sflag [#allocation6], 1
    %17 = vsyncpa %s16, 0
    loop: start=0, step=1, limit=4
    $region2: #{tpu_custom_call.1} parent=1 // loop_pre_header
      _
    $region3: #{tpu_custom_call.1} parent=1 // loop_header
      %s19 = sphi 0, %s23
      %p20 = scmp.ge.s32.totalorder %s19, 4
      %s26 = sphi 0, %s38
      %s27 = sphi 0, %s34
      %s28 = sphi 0, %s26
      %s29 = sphi 0, %s27
      %s30 = sphi 0, %s28
      %s31 = sphi 0, %s29
      %s43 = sphi 0, %s45
      %s46 = sphi 0, %s43
      %s47 = sphi 0, %s46
      %s63 = sphi 0, %s47
      %s67 = sphi 0, %s67
      %s69 = sphi 0, %s67
      %s70 = sphi 0, %s69
      %s84 = sphi 0, %s70
      %s88 = sphi 0, %s88
      %s90 = sphi 0, %s88
      %s91 = sphi 0, %s90
      %s105 = sphi 0, %s91
      %s109 = sphi 0, %s109
      %s111 = sphi 0, %s109
      %s112 = sphi 0, %s111
      %s126 = sphi 0, %s112
      %s130 = sphi 0, %s130
      %s132 = sphi 0, %s130
      %s133 = sphi 0, %s132
      %s147 = sphi 0, %s133
      %s155 = sphi 0, %s157
      %s158 = sphi 0, %s155
      %s159 = sphi 0, %s158
      %s175 = sphi 0, %s159
      %s183 = sphi 0, %s185
      %s186 = sphi 0, %s183
      %s187 = sphi 0, %s186
      %s203 = sphi 0, %s187
    $region4: #{tpu_custom_call.1} parent=1 // loop_header_branch
      %22 = sbr.rel (%p20) target = $region8
    $region5: #{tpu_custom_call.1} parent=1 // loop_body
      %s24 = ssub.s32 %s19, 1
      %s25 = ssub.s32 %s19, 2
      %s32 = sadd.s32 1, %s27
      %p33 = scmp.ge.s32.totalorder %s32, 1
      %s34 = scalar_select %p33, 0, %s32
      %s35 = sadd.s32 1, %s26
      %s36 = scalar_select %p33, %s35, %s26
      %p37 = scmp.ge.s32.totalorder %s36, 2
      %s38 = scalar_select %p37, 0, %s36
      %s39 = ssub.s32 %s26, %s38
      %s40 = ssub.s32 %s27, %s34
      %s41 = sor.u32 %s39, %s40
      %p42 = scmp.eq.s32.totalorder %s41, 0
      %s44 = sadd.s32 %s43, 1
      %s45 = scalar_select %p42, %s43, %s44
      %p48 = pneg %p42
      %p49 = scmp.eq.s32.totalorder %s19, 1
      %p50 = por %p48, %p49
      %p51 = scmp.ne.s32.totalorder %s43, %s46
      %p52 = scmp.eq.s32.totalorder %s19, 0
      %p53 = por %p51, %p52
      %p54 = scmp.ne.s32.totalorder %s43, %s46
      %p55 = scmp.eq.s32.totalorder %s24, 1
      %p56 = por %p54, %p55
      %p57 = scmp.ne.s32.totalorder %s46, %s47
      %p58 = scmp.eq.s32.totalorder %s24, 0
      %p59 = por %p57, %p58
      %p60 = scmp.ne.s32.totalorder %s46, %s47
      %p61 = scmp.eq.s32.totalorder %s25, 1
      %p62 = por %p60, %p61
      %p64 = scmp.ne.s32.totalorder %s47, %s63
      %p65 = scmp.eq.s32.totalorder %s25, 0
      %p66 = por %p64, %p65
      %s68 = sadd.s32 %s67, 1
      %p71 = scmp.eq.s32.totalorder %s19, 1
      %p72 = scmp.ne.s32.totalorder %s67, %s69
      %p73 = scmp.eq.s32.totalorder %s19, 0
      %p74 = por %p72, %p73
      %p75 = scmp.ne.s32.totalorder %s67, %s69
      %p76 = scmp.eq.s32.totalorder %s24, 1
      %p77 = por %p75, %p76
      %p78 = scmp.ne.s32.totalorder %s69, %s70
      %p79 = scmp.eq.s32.totalorder %s24, 0
      %p80 = por %p78, %p79
      %p81 = scmp.ne.s32.totalorder %s69, %s70
      %p82 = scmp.eq.s32.totalorder %s25, 1
      %p83 = por %p81, %p82
      %p85 = scmp.ne.s32.totalorder %s70, %s84
      %p86 = scmp.eq.s32.totalorder %s25, 0
      %p87 = por %p85, %p86
      %s89 = sadd.s32 %s88, 1
      %p92 = scmp.eq.s32.totalorder %s19, 1
      %p93 = scmp.ne.s32.totalorder %s88, %s90
      %p94 = scmp.eq.s32.totalorder %s19, 0
      %p95 = por %p93, %p94
      %p96 = scmp.ne.s32.totalorder %s88, %s90
      %p97 = scmp.eq.s32.totalorder %s24, 1
      %p98 = por %p96, %p97
      %p99 = scmp.ne.s32.totalorder %s90, %s91
      %p100 = scmp.eq.s32.totalorder %s24, 0
      %p101 = por %p99, %p100
      %p102 = scmp.ne.s32.totalorder %s90, %s91
      %p103 = scmp.eq.s32.totalorder %s25, 1
      %p104 = por %p102, %p103
      %p106 = scmp.ne.s32.totalorder %s91, %s105
      %p107 = scmp.eq.s32.totalorder %s25, 0
      %p108 = por %p106, %p107
      %s110 = sadd.s32 %s109, 1
      %p113 = scmp.eq.s32.totalorder %s19, 1
      %p114 = scmp.ne.s32.totalorder %s109, %s111
      %p115 = scmp.eq.s32.totalorder %s19, 0
      %p116 = por %p114, %p115
      %p117 = scmp.ne.s32.totalorder %s109, %s111
      %p118 = scmp.eq.s32.totalorder %s24, 1
      %p119 = por %p117, %p118
      %p120 = scmp.ne.s32.totalorder %s111, %s112
      %p121 = scmp.eq.s32.totalorder %s24, 0
      %p122 = por %p120, %p121
      %p123 = scmp.ne.s32.totalorder %s111, %s112
      %p124 = scmp.eq.s32.totalorder %s25, 1
      %p125 = por %p123, %p124
      %p127 = scmp.ne.s32.totalorder %s112, %s126
      %p128 = scmp.eq.s32.totalorder %s25, 0
      %p129 = por %p127, %p128
      %s131 = sadd.s32 %s130, 1
      %p134 = scmp.eq.s32.totalorder %s19, 1
      %p135 = scmp.ne.s32.totalorder %s130, %s132
      %p136 = scmp.eq.s32.totalorder %s19, 0
      %p137 = por %p135, %p136
      %p138 = scmp.ne.s32.totalorder %s130, %s132
      %p139 = scmp.eq.s32.totalorder %s24, 1
      %p140 = por %p138, %p139
      %p141 = scmp.ne.s32.totalorder %s132, %s133
      %p142 = scmp.eq.s32.totalorder %s24, 0
      %p143 = por %p141, %p142
      %p144 = scmp.ne.s32.totalorder %s132, %s133
      %p145 = scmp.eq.s32.totalorder %s25, 1
      %p146 = por %p144, %p145
      %p148 = scmp.ne.s32.totalorder %s133, %s147
      %p149 = scmp.eq.s32.totalorder %s25, 0
      %p150 = por %p148, %p149
      %s151 = ssub.s32 %s26, %s38
      %s152 = ssub.s32 %s27, %s34
      %s153 = sor.u32 %s151, %s152
      %p154 = scmp.eq.s32.totalorder %s153, 0
      %s156 = sadd.s32 %s155, 1
      %s157 = scalar_select %p154, %s155, %s156
      %p160 = pneg %p154
      %p161 = scmp.eq.s32.totalorder %s19, 1
      %p162 = por %p160, %p161
      %p163 = scmp.ne.s32.totalorder %s155, %s158
      %p164 = scmp.eq.s32.totalorder %s19, 0
      %p165 = por %p163, %p164
      %p166 = scmp.ne.s32.totalorder %s155, %s158
      %p167 = scmp.eq.s32.totalorder %s24, 1
      %p168 = por %p166, %p167
      %p169 = scmp.ne.s32.totalorder %s158, %s159
      %p170 = scmp.eq.s32.totalorder %s24, 0
      %p171 = por %p169, %p170
      %p172 = scmp.ne.s32.totalorder %s158, %s159
      %p173 = scmp.eq.s32.totalorder %s25, 1
      %p174 = por %p172, %p173
      %p176 = scmp.ne.s32.totalorder %s159, %s175
      %p177 = scmp.eq.s32.totalorder %s25, 0
      %p178 = por %p176, %p177
      %s179 = ssub.s32 %s26, %s38
      %s180 = ssub.s32 %s27, %s34
      %s181 = sor.u32 %s179, %s180
      %p182 = scmp.eq.s32.totalorder %s181, 0
      %s184 = sadd.s32 %s183, 1
      %s185 = scalar_select %p182, %s183, %s184
      %p188 = pneg %p182
      %p189 = scmp.eq.s32.totalorder %s19, 1
      %p190 = por %p188, %p189
      %p191 = scmp.ne.s32.totalorder %s183, %s186
      %p192 = scmp.eq.s32.totalorder %s19, 0
      %p193 = por %p191, %p192
      %p194 = scmp.ne.s32.totalorder %s183, %s186
      %p195 = scmp.eq.s32.totalorder %s24, 1
      %p196 = por %p194, %p195
      %p197 = scmp.ne.s32.totalorder %s186, %s187
      %p198 = scmp.eq.s32.totalorder %s24, 0
      %p199 = por %p197, %p198
      %p200 = scmp.ne.s32.totalorder %s186, %s187
      %p201 = scmp.eq.s32.totalorder %s25, 1
      %p202 = por %p200, %p201
      %p204 = scmp.ne.s32.totalorder %s187, %s203
      %p205 = scmp.eq.s32.totalorder %s25, 0
      %p206 = por %p204, %p205
      %p207 = scmp.le.s32.totalorder 1, %s19
      %p208 = scmp.lt.s32.totalorder %s19, 3
      %p209 = pnand %p207, %p208
      %p210 = pneg %p209
      // Predicated region
      $region9: #{tpu_custom_call.1} parent=5 // pred_check
        _
      $region10: #{tpu_custom_call.1} parent=5 // pred_check_branch
        %212 = sbr.rel (%p209) target = $region12
      $region11: #{tpu_custom_call.1} parent=5 // pred_region
        %s213 = ssub.s32 %s19, 1
        // Predicated region
        $region13: #{tpu_custom_call.1} parent=11 // pred_check
          %p214 = pneg %p80
        $region14: #{tpu_custom_call.1} parent=11 // pred_check_branch
          %216 = sbr.rel (%p214) target = $region16
        $region15: #{tpu_custom_call.1} parent=11 // pred_region
          _
        $region16: #{tpu_custom_call.1} parent=11 // pred_fallthru
          _
        // Predicated region
        $region17: #{tpu_custom_call.1} parent=11 // pred_check
          %p217 = pneg %p101
        $region18: #{tpu_custom_call.1} parent=11 // pred_check_branch
          %219 = sbr.rel (%p217) target = $region20
        $region19: #{tpu_custom_call.1} parent=11 // pred_region
          _
        $region20: #{tpu_custom_call.1} parent=11 // pred_fallthru
          _
        // Predicated region
        $region21: #{tpu_custom_call.1} parent=11 // pred_check
          %p220 = pneg %p122
        $region22: #{tpu_custom_call.1} parent=11 // pred_check_branch
          %222 = sbr.rel (%p220) target = $region24
        $region23: #{tpu_custom_call.1} parent=11 // pred_region
          _
        $region24: #{tpu_custom_call.1} parent=11 // pred_fallthru
          _
        // Predicated region
        $region25: #{tpu_custom_call.1} parent=11 // pred_check
          %p223 = pneg %p143
        $region26: #{tpu_custom_call.1} parent=11 // pred_check_branch
          %225 = sbr.rel (%p223) target = $region28
        $region27: #{tpu_custom_call.1} parent=11 // pred_region
          _
        $region28: #{tpu_custom_call.1} parent=11 // pred_fallthru
          _
      $region12: #{tpu_custom_call.1} parent=5 // pred_fallthru
        _
      %p226 = scmp.lt.s32.totalorder %s19, 2
      // Predicated region
      $region29: #{tpu_custom_call.1} parent=5 // pred_check
        %p227 = pneg %p226
      $region30: #{tpu_custom_call.1} parent=5 // pred_check_branch
        %229 = sbr.rel (%p227) target = $region32
      $region31: #{tpu_custom_call.1} parent=5 // pred_region
        // Predicated region
        $region33: #{tpu_custom_call.1} parent=31 // pred_check
          %p230 = pneg %p53
        $region34: #{tpu_custom_call.1} parent=31 // pred_check_branch
          %232 = sbr.rel (%p230) target = $region36
        $region35: #{tpu_custom_call.1} parent=31 // pred_region
          %p233 = scmp.lt.s32.totalorder %s26, 1
          %s234 = scalar_select %p233, %s26, 1
          %p235 = scmp.lt.s32.totalorder %s27, 0
          %s236 = scalar_select %p235, %s27, 0
          %s237 = sadd.s32 %s236, %s234
          %s238 = smul.addr %s237, 4
          %s239 = scalar_lea.vmem %s0, %s238
        $region36: #{tpu_custom_call.1} parent=31 // pred_fallthru
          _
      $region32: #{tpu_custom_call.1} parent=5 // pred_fallthru
        _
      %p240 = scmp.le.s32.totalorder 1, %s19
      %p241 = scmp.lt.s32.totalorder %s19, 3
      %p242 = pnand %p240, %p241
      %p243 = pneg %p242
      // Predicated region
      $region37: #{tpu_custom_call.1} parent=5 // pred_check
        _
      $region38: #{tpu_custom_call.1} parent=5 // pred_check_branch
        %245 = sbr.rel (%p242) target = $region40
      $region39: #{tpu_custom_call.1} parent=5 // pred_region
        %s246 = ssub.s32 %s19, 1
        %p247 = scmp.lt.s32.totalorder %s28, 1
        %s248 = scalar_select %p247, %s28, 1
        %p249 = scmp.lt.s32.totalorder %s29, 0
        %s250 = scalar_select %p249, %s29, 0
        %s251 = sadd.s32 %s250, %s248
        %s252 = smul.addr %s251, 4
        %s253 = scalar_lea.vmem %s0, %s252
        %p254 = pneg %p59
        %p255 = pneg %p56
        %p256 = pneg %p80
        %p257 = pneg %p77
        %p258 = pneg %p101
        %p259 = pneg %p98
        %p260 = pneg %p122
        %p261 = pneg %p119
        %p262 = pneg %p143
        %p263 = pneg %p140
        %p264 = pneg %p171
        %p265 = pneg %p168
        %s266 = sand.u32 %s158, 1
        %s267 = scalar_lea.sflag [#allocation4], %s266
        %s268 = sand.u32 %s158, 1
        %s269 = smul.addr %s268, 4
        %s270 = scalar_lea.vmem [#allocation3], %s269
        %p271 = pneg %p199
        %p272 = pneg %p196
        %s273 = sand.u32 %s186, 1
        %s274 = scalar_lea.sflag [#allocation6], %s273
        %s275 = sand.u32 %s186, 1
        %s276 = smul.addr %s275, 4
        %s277 = scalar_lea.vmem [#allocation5], %s276
        %p278 = scmp.lt.s32.totalorder %s28, 1
        %s279 = scalar_select %p278, %s28, 1
        %p280 = scmp.lt.s32.totalorder %s29, 0
        %s281 = scalar_select %p280, %s29, 0
        %s282 = sadd.s32 %s281, %s279
        %s283 = smul.addr %s282, 4
        %s284 = scalar_lea.vmem %s0, %s283
        %p285 = scmp.eq.s32.totalorder %s29, 0
        // Predicated region
        $region41: #{tpu_custom_call.1} parent=39 // pred_check
          %p286 = pneg %p285
        $region42: #{tpu_custom_call.1} parent=39 // pred_check_branch
          %288 = sbr.rel (%p286) target = $region44
        $region43: #{tpu_custom_call.1} parent=39 // pred_region
          %289 = vst [vmem:[#allocation2] sm:$0xf] 0.0
        $region44: #{tpu_custom_call.1} parent=39 // pred_fallthru
          _
        %v290 = vld [vmem:[%s284] sm:$0xf]
        %291 = vst [vmem:[#allocation2 + $0x4] sm:$0xf] %v290
        %v292 = vld [vmem:[%s2] sm:$0xff]
        %v293 = vld [vmem:[%s1] sm:$0xff]
        %v294 = vld [vmem:[#allocation2 + $0x4] sm:$0xf]
        %296 = vrot.lane.b32.xlu0 %v293, 120
        %v297 = vpop.permute.xlu0 %296
        %vm298 = vcmask 31744
        %v299 = vsel %vm298, %v297, 0
        %vm301 = vcmask 1043456
        %v303 = vsel %vm301, %v294, 0
        %305 = vmatprep.subr.mxu0 0.0
        %306 = vmatpush1.msra.mxu0 %v303
        %307 = vmatprep.subr.mxu0 0.0
        %308 = vmatpush1.msra.mxu0 0.0
        %309 = vmatprep.subr.mxu0 0.0
        %310 = vmatpush1.msra.mxu0 0.0
        %311 = vmatprep.subr.mxu0 0.0
        %312 = vmatpush1.msra.mxu0 0.0
        %313 = vmatprep.subr.mxu0 0.0
        %314 = vmatpush1.msra.mxu0 0.0
        %315 = vmatprep.subr.mxu0 0.0
        %316 = vmatpush1.msra.mxu0 0.0
        %317 = vmatprep.subr.mxu0 0.0
        %318 = vmatpush1.msra.mxu0 0.0
        %319 = vmatprep.subr.mxu0 0.0
        %320 = vmatpush1.msra.mxu0 0.0
        %321 = vmatprep.subr.mxu0 0.0
        %322 = vmatpush1.msra.mxu0 0.0
        %323 = vmatprep.subr.mxu0 0.0
        %324 = vmatpush1.msra.mxu0 0.0
        %325 = vmatprep.subr.mxu0 0.0
        %326 = vmatpush1.msra.mxu0 0.0
        %327 = vmatprep.subr.mxu0 0.0
        %328 = vmatpush1.msra.mxu0 0.0
        %329 = vmatprep.subr.mxu0 0.0
        %330 = vmatpush1.msra.mxu0 0.0
        %331 = vmatprep.subr.mxu0 0.0
        %332 = vmatpush1.msra.mxu0 0.0
        %333 = vmatprep.subr.mxu0 0.0
        %334 = vmatpush1.msra.mxu0 0.0
        %335 = vmatprep.subr.mxu0 0.0
        %336 = vmatpush1.msra.mxu0 0.0
        %337 = vmatprep.subr.mxu0 0.0
        %338 = vmatpush1.msra.mxu0 0.0
        %339 = vmatprep.subr.mxu0 0.0
        %340 = vmatpush1.msra.mxu0 0.0
        %341 = vmatprep.subr.mxu0 0.0
        %342 = vmatpush1.msra.mxu0 0.0
        %343 = vmatprep.subr.mxu0 0.0
        %344 = vmatpush1.msra.mxu0 0.0
        %345 = vmatprep.subr.mxu0 0.0
        %346 = vmatpush1.msra.mxu0 0.0
        %347 = vmatprep.subr.mxu0 0.0
        %348 = vmatpush1.msra.mxu0 0.0
        %349 = vmatprep.subr.mxu0 0.0
        %350 = vmatpush1.msra.mxu0 0.0
        %351 = vmatprep.subr.mxu0 0.0
        %352 = vmatpush1.msra.mxu0 0.0
        %353 = vmatprep.subr.mxu0 0.0
        %354 = vmatpush1.msra.mxu0 0.0
        %355 = vmatprep.subr.mxu0 0.0
        %356 = vmatpush1.msra.mxu0 0.0
        %357 = vmatprep.subr.mxu0 0.0
        %358 = vmatpush1.msra.mxu0 0.0
        %359 = vmatprep.subr.mxu0 0.0
        %360 = vmatpush1.msra.mxu0 0.0
        %361 = vmatprep.subr.mxu0 0.0
        %362 = vmatpush1.msra.mxu0 0.0
        %363 = vmatprep.subr.mxu0 0.0
        %364 = vmatpush1.msra.mxu0 0.0
        %365 = vmatprep.subr.mxu0 0.0
        %366 = vmatpush1.msra.mxu0 0.0
        %367 = vmatprep.subr.mxu0 0.0
        %368 = vmatpush1.msra.mxu0 0.0
        %369 = vmatprep.mubr.f32.mxu0 0.0
        %370 = vmatmul.mubr.f32.gmra.mrb[0].mxu0 %v299
        %v371 = vpop.f32.mrb[0].mxu0
        %v372 = vadd.f32 0.0, %v371
        %v373 = vpop.f32.mrb[0].mxu0
        %374 = vdwg.mxu0
        %376 = vset.pattern.permute.xlu0 0
        %377 = vperm.xlu0 %376, %v292
        %v378 = vpop.permute.xlu0 %377
        %v380 = vadd.f32 %v378, %v372
        %v381 = vld [vmem:[#allocation2] sm:$0xff]
        %v383 = vcombine.high %v381, %v381
        %384 = vrot.lane.b32.xlu0 %v381, 4
        %v385 = vpop.permute.xlu0 %384
        %386 = vrot.lane.b32.xlu0 %v383, 4
        %v387 = vpop.permute.xlu0 %386
        %v388 = vsel %vm298, %v385, %v387
        %v389 = vsel %vm298, %v293, 0
        %v391 = vsel %vm301, %v388, 0
        %393 = vmatprep.subr.mxu0 0.0
        %394 = vmatpush1.msra.mxu0 %v391
        %395 = vmatprep.subr.mxu0 0.0
        %396 = vmatpush1.msra.mxu0 0.0
        %397 = vmatprep.subr.mxu0 0.0
        %398 = vmatpush1.msra.mxu0 0.0
        %399 = vmatprep.subr.mxu0 0.0
        %400 = vmatpush1.msra.mxu0 0.0
        %401 = vmatprep.subr.mxu0 0.0
        %402 = vmatpush1.msra.mxu0 0.0
        %403 = vmatprep.subr.mxu0 0.0
        %404 = vmatpush1.msra.mxu0 0.0
        %405 = vmatprep.subr.mxu0 0.0
        %406 = vmatpush1.msra.mxu0 0.0
        %407 = vmatprep.subr.mxu0 0.0
        %408 = vmatpush1.msra.mxu0 0.0
        %409 = vmatprep.subr.mxu0 0.0
        %410 = vmatpush1.msra.mxu0 0.0
        %411 = vmatprep.subr.mxu0 0.0
        %412 = vmatpush1.msra.mxu0 0.0
        %413 = vmatprep.subr.mxu0 0.0
        %414 = vmatpush1.msra.mxu0 0.0
        %415 = vmatprep.subr.mxu0 0.0
        %416 = vmatpush1.msra.mxu0 0.0
        %417 = vmatprep.subr.mxu0 0.0
        %418 = vmatpush1.msra.mxu0 0.0
        %419 = vmatprep.subr.mxu0 0.0
        %420 = vmatpush1.msra.mxu0 0.0
        %421 = vmatprep.subr.mxu0 0.0
        %422 = vmatpush1.msra.mxu0 0.0
        %423 = vmatprep.subr.mxu0 0.0
        %424 = vmatpush1.msra.mxu0 0.0
        %425 = vmatprep.subr.mxu0 0.0
        %426 = vmatpush1.msra.mxu0 0.0
        %427 = vmatprep.subr.mxu0 0.0
        %428 = vmatpush1.msra.mxu0 0.0
        %429 = vmatprep.subr.mxu0 0.0
        %430 = vmatpush1.msra.mxu0 0.0
        %431 = vmatprep.subr.mxu0 0.0
        %432 = vmatpush1.msra.mxu0 0.0
        %433 = vmatprep.subr.mxu0 0.0
        %434 = vmatpush1.msra.mxu0 0.0
        %435 = vmatprep.subr.mxu0 0.0
        %436 = vmatpush1.msra.mxu0 0.0
        %437 = vmatprep.subr.mxu0 0.0
        %438 = vmatpush1.msra.mxu0 0.0
        %439 = vmatprep.subr.mxu0 0.0
        %440 = vmatpush1.msra.mxu0 0.0
        %441 = vmatprep.subr.mxu0 0.0
        %442 = vmatpush1.msra.mxu0 0.0
        %443 = vmatprep.subr.mxu0 0.0
        %444 = vmatpush1.msra.mxu0 0.0
        %445 = vmatprep.subr.mxu0 0.0
        %446 = vmatpush1.msra.mxu0 0.0
        %447 = vmatprep.subr.mxu0 0.0
        %448 = vmatpush1.msra.mxu0 0.0
        %449 = vmatprep.subr.mxu0 0.0
        %450 = vmatpush1.msra.mxu0 0.0
        %451 = vmatprep.subr.mxu0 0.0
        %452 = vmatpush1.msra.mxu0 0.0
        %453 = vmatprep.subr.mxu0 0.0
        %454 = vmatpush1.msra.mxu0 0.0
        %455 = vmatprep.subr.mxu0 0.0
        %456 = vmatpush1.msra.mxu0 0.0
        %457 = vmatprep.mubr.f32.mxu0 0.0
        %458 = vmatmul.mubr.f32.gmra.mrb[0].mxu0 %v389
        %v459 = vpop.f32.mrb[0].mxu0
        %v460 = vadd.f32 0.0, %v459
        %v461 = vpop.f32.mrb[0].mxu0
        %462 = vdwg.mxu0
        %v463 = vadd.f32 %v380, %v460
        %v464 = vld [vmem:[%s1] sm:$0xff]
        %v465 = vld [vmem:[#allocation2] sm:$0xff]
        %467 = vrot.lane.b32.xlu0 %v464, 124
        %v468 = vpop.permute.xlu0 %467
        %v470 = vcombine.high %v465, %v465
        %471 = vrot.lane.b32.xlu0 %v465, 2
        %v472 = vpop.permute.xlu0 %471
        %473 = vrot.lane.b32.xlu0 %v470, 2
        %v474 = vpop.permute.xlu0 %473
        %vm475 = vcmask 15360
        %v476 = vsel %vm475, %v472, %v474
        %v477 = vsel %vm298, %v468, 0
        %v479 = vsel %vm301, %v476, 0
        %481 = vmatprep.subr.mxu0 0.0
        %482 = vmatpush1.msra.mxu0 %v479
        %483 = vmatprep.subr.mxu0 0.0
        %484 = vmatpush1.msra.mxu0 0.0
        %485 = vmatprep.subr.mxu0 0.0
        %486 = vmatpush1.msra.mxu0 0.0
        %487 = vmatprep.subr.mxu0 0.0
        %488 = vmatpush1.msra.mxu0 0.0
        %489 = vmatprep.subr.mxu0 0.0
        %490 = vmatpush1.msra.mxu0 0.0
        %491 = vmatprep.subr.mxu0 0.0
        %492 = vmatpush1.msra.mxu0 0.0
        %493 = vmatprep.subr.mxu0 0.0
        %494 = vmatpush1.msra.mxu0 0.0
        %495 = vmatprep.subr.mxu0 0.0
        %496 = vmatpush1.msra.mxu0 0.0
        %497 = vmatprep.subr.mxu0 0.0
        %498 = vmatpush1.msra.mxu0 0.0
        %499 = vmatprep.subr.mxu0 0.0
        %500 = vmatpush1.msra.mxu0 0.0
        %501 = vmatprep.subr.mxu0 0.0
        %502 = vmatpush1.msra.mxu0 0.0
        %503 = vmatprep.subr.mxu0 0.0
        %504 = vmatpush1.msra.mxu0 0.0
        %505 = vmatprep.subr.mxu0 0.0
        %506 = vmatpush1.msra.mxu0 0.0
        %507 = vmatprep.subr.mxu0 0.0
        %508 = vmatpush1.msra.mxu0 0.0
        %509 = vmatprep.subr.mxu0 0.0
        %510 = vmatpush1.msra.mxu0 0.0
        %511 = vmatprep.subr.mxu0 0.0
        %512 = vmatpush1.msra.mxu0 0.0
        %513 = vmatprep.subr.mxu0 0.0
        %514 = vmatpush1.msra.mxu0 0.0
        %515 = vmatprep.subr.mxu0 0.0
        %516 = vmatpush1.msra.mxu0 0.0
        %517 = vmatprep.subr.mxu0 0.0
        %518 = vmatpush1.msra.mxu0 0.0
        %519 = vmatprep.subr.mxu0 0.0
        %520 = vmatpush1.msra.mxu0 0.0
        %521 = vmatprep.subr.mxu0 0.0
        %522 = vmatpush1.msra.mxu0 0.0
        %523 = vmatprep.subr.mxu0 0.0
        %524 = vmatpush1.msra.mxu0 0.0
        %525 = vmatprep.subr.mxu0 0.0
        %526 = vmatpush1.msra.mxu0 0.0
        %527 = vmatprep.subr.mxu0 0.0
        %528 = vmatpush1.msra.mxu0 0.0
        %529 = vmatprep.subr.mxu0 0.0
        %530 = vmatpush1.msra.mxu0 0.0
        %531 = vmatprep.subr.mxu0 0.0
        %532 = vmatpush1.msra.mxu0 0.0
        %533 = vmatprep.subr.mxu0 0.0
        %534 = vmatpush1.msra.mxu0 0.0
        %535 = vmatprep.subr.mxu0 0.0
        %536 = vmatpush1.msra.mxu0 0.0
        %537 = vmatprep.subr.mxu0 0.0
        %538 = vmatpush1.msra.mxu0 0.0
        %539 = vmatprep.subr.mxu0 0.0
        %540 = vmatpush1.msra.mxu0 0.0
        %541 = vmatprep.subr.mxu0 0.0
        %542 = vmatpush1.msra.mxu0 0.0
        %543 = vmatprep.subr.mxu0 0.0
        %544 = vmatpush1.msra.mxu0 0.0
        %545 = vmatprep.mubr.f32.mxu0 0.0
        %546 = vmatmul.mubr.f32.gmra.mrb[0].mxu0 %v477
        %v547 = vpop.f32.mrb[0].mxu0
        %v548 = vadd.f32 0.0, %v547
        %v549 = vpop.f32.mrb[0].mxu0
        %550 = vdwg.mxu0
        %v551 = vadd.f32 %v463, %v548
        %v552 = vtanh.pop %v551
        %v553 = vxor.u32 %v551, 2147483648
        %v554 = vmul.f32 %v553, 1.442695
        %v555 = vpow.pop %v554
        %v556 = vadd.f32 %v555, 1.0
        %v557 = vrcp.pop %v556
        %v558 = vmul.f32 1.0, %v557
        %v560 = vrot.slane %v558, 4
        %v562 = vmul.f32 %v552, %v560
        %v563 = vld [vmem:[%s3] sm:$0xf]
        %v564 = vld [vmem:[%s4] sm:$0xf]
        %566 = vset.pattern.permute.xlu0 0
        %567 = vperm.xlu0 %566, %v564
        %v568 = vpop.permute.xlu0 %567
        %v571 = vsel %vm298, %v563, 0
        %v574 = vsel %vm301, %v562, 0
        %576 = vmatprep.subr.mxu0 0.0
        %577 = vmatpush1.msra.mxu0 %v574
        %578 = vmatprep.subr.mxu0 0.0
        %579 = vmatpush1.msra.mxu0 0.0
        %580 = vmatprep.subr.mxu0 0.0
        %581 = vmatpush1.msra.mxu0 0.0
        %582 = vmatprep.subr.mxu0 0.0
        %583 = vmatpush1.msra.mxu0 0.0
        %584 = vmatprep.subr.mxu0 0.0
        %585 = vmatpush1.msra.mxu0 0.0
        %586 = vmatprep.subr.mxu0 0.0
        %587 = vmatpush1.msra.mxu0 0.0
        %588 = vmatprep.subr.mxu0 0.0
        %589 = vmatpush1.msra.mxu0 0.0
        %590 = vmatprep.subr.mxu0 0.0
        %591 = vmatpush1.msra.mxu0 0.0
        %592 = vmatprep.subr.mxu0 0.0
        %593 = vmatpush1.msra.mxu0 0.0
        %594 = vmatprep.subr.mxu0 0.0
        %595 = vmatpush1.msra.mxu0 0.0
        %596 = vmatprep.subr.mxu0 0.0
        %597 = vmatpush1.msra.mxu0 0.0
        %598 = vmatprep.subr.mxu0 0.0
        %599 = vmatpush1.msra.mxu0 0.0
        %600 = vmatprep.subr.mxu0 0.0
        %601 = vmatpush1.msra.mxu0 0.0
        %602 = vmatprep.subr.mxu0 0.0
        %603 = vmatpush1.msra.mxu0 0.0
        %604 = vmatprep.subr.mxu0 0.0
        %605 = vmatpush1.msra.mxu0 0.0
        %606 = vmatprep.subr.mxu0 0.0
        %607 = vmatpush1.msra.mxu0 0.0
        %608 = vmatprep.subr.mxu0 0.0
        %609 = vmatpush1.msra.mxu0 0.0
        %610 = vmatprep.subr.mxu0 0.0
        %611 = vmatpush1.msra.mxu0 0.0
        %612 = vmatprep.subr.mxu0 0.0
        %613 = vmatpush1.msra.mxu0 0.0
        %614 = vmatprep.subr.mxu0 0.0
        %615 = vmatpush1.msra.mxu0 0.0
        %616 = vmatprep.subr.mxu0 0.0
        %617 = vmatpush1.msra.mxu0 0.0
        %618 = vmatprep.subr.mxu0 0.0
        %619 = vmatpush1.msra.mxu0 0.0
        %620 = vmatprep.subr.mxu0 0.0
        %621 = vmatpush1.msra.mxu0 0.0
        %622 = vmatprep.subr.mxu0 0.0
        %623 = vmatpush1.msra.mxu0 0.0
        %624 = vmatprep.subr.mxu0 0.0
        %625 = vmatpush1.msra.mxu0 0.0
        %626 = vmatprep.subr.mxu0 0.0
        %627 = vmatpush1.msra.mxu0 0.0
        %628 = vmatprep.subr.mxu0 0.0
        %629 = vmatpush1.msra.mxu0 0.0
        %630 = vmatprep.subr.mxu0 0.0
        %631 = vmatpush1.msra.mxu0 0.0
        %632 = vmatprep.subr.mxu0 0.0
        %633 = vmatpush1.msra.mxu0 0.0
        %634 = vmatprep.subr.mxu0 0.0
        %635 = vmatpush1.msra.mxu0 0.0
        %636 = vmatprep.subr.mxu0 0.0
        %637 = vmatpush1.msra.mxu0 0.0
        %638 = vmatprep.subr.mxu0 0.0
        %639 = vmatpush1.msra.mxu0 0.0
        %640 = vmatprep.mubr.f32.mxu0 0.0
        %641 = vmatmul.mubr.f32.gmra.mrb[0].mxu0 %v571
        %v642 = vpop.f32.mrb[0].mxu0
        %v643 = vadd.f32 %v568, %v642
        %v644 = vpop.f32.mrb[0].mxu0
        %645 = vdwg.mxu0
        %646 = vst [vmem:[%s277] sm:$0xf] %v643
        %v647 = vld [vmem:[%s284] sm:$0xf]
        %v648 = vadd.f32 %v647, %v643
        %649 = vst [vmem:[%s270] sm:$0xf] %v648
        %v650 = vld [vmem:[#allocation2 + $0x4] sm:$0xf]
        %651 = vst [vmem:[#allocation2] sm:$0xf] %v650
        %s652 = sand.u32 %s158, 1
        %s653 = scalar_lea.sflag [#allocation4], %s652
        %s654 = sand.u32 %s158, 1
        %s655 = smul.addr %s654, 4
        %s656 = scalar_lea.vmem [#allocation3], %s655
        %s657 = sand.u32 %s186, 1
        %s658 = scalar_lea.sflag [#allocation6], %s657
        %s659 = sand.u32 %s186, 1
        %s660 = smul.addr %s659, 4
        %s661 = scalar_lea.vmem [#allocation5], %s660
        // Predicated region
        $region45: #{tpu_custom_call.1} parent=39 // pred_check
          %p662 = pneg %p168
        $region46: #{tpu_custom_call.1} parent=39 // pred_check_branch
          %664 = sbr.rel (%p662) target = $region48
        $region47: #{tpu_custom_call.1} parent=39 // pred_region
          %s666 = ssub.s32 64, 64
          %667 = vsyncadd %s653, %s666
          %s668 = sadd.s32 %s29, %s28
          %s669 = smul.addr %s668, 64
          %s670 = scalar_lea.hbm %s5, %s669
          %s672 = sshll.u32 %s656, 4
          %s673 = int_to_ptr.vmem [resolvable:$true] %s672
          %675 = dma.vmem_to_hbm [thread:$0]  %s673, 64, %s670, %s653
        $region48: #{tpu_custom_call.1} parent=39 // pred_fallthru
          _
        // Predicated region
        $region49: #{tpu_custom_call.1} parent=39 // pred_check
          %p676 = pneg %p196
        $region50: #{tpu_custom_call.1} parent=39 // pred_check_branch
          %678 = sbr.rel (%p676) target = $region52
        $region51: #{tpu_custom_call.1} parent=39 // pred_region
          %s680 = ssub.s32 64, 64
          %681 = vsyncadd %s658, %s680
          %s682 = sadd.s32 %s29, %s28
          %s683 = smul.addr %s682, 64
          %s684 = scalar_lea.hbm %s6, %s683
          %s686 = sshll.u32 %s661, 4
          %s687 = int_to_ptr.vmem [resolvable:$true] %s686
          %689 = dma.vmem_to_hbm [thread:$0]  %s687, 64, %s684, %s658
        $region52: #{tpu_custom_call.1} parent=39 // pred_fallthru
          _
      $region40: #{tpu_custom_call.1} parent=5 // pred_fallthru
        _
      %p690 = scmp.le.s32.totalorder 2, %s19
      // Predicated region
      $region53: #{tpu_custom_call.1} parent=5 // pred_check
        %p691 = pneg %p690
      $region54: #{tpu_custom_call.1} parent=5 // pred_check_branch
        %693 = sbr.rel (%p691) target = $region56
      $region55: #{tpu_custom_call.1} parent=5 // pred_region
        %s694 = ssub.s32 %s19, 2
        // Predicated region
        $region57: #{tpu_custom_call.1} parent=55 // pred_check
          %p695 = pneg %p174
        $region58: #{tpu_custom_call.1} parent=55 // pred_check_branch
          %697 = sbr.rel (%p695) target = $region60
        $region59: #{tpu_custom_call.1} parent=55 // pred_region
          %s698 = sand.u32 %s159, 1
          %s699 = scalar_lea.sflag [#allocation4], %s698
          %s700 = sand.u32 %s159, 1
          %s701 = smul.addr %s700, 4
          %s702 = scalar_lea.vmem [#allocation3], %s701
          %703 = dma.done %s699, 64
        $region60: #{tpu_custom_call.1} parent=55 // pred_fallthru
          _
        // Predicated region
        $region61: #{tpu_custom_call.1} parent=55 // pred_check
          %p704 = pneg %p202
        $region62: #{tpu_custom_call.1} parent=55 // pred_check_branch
          %706 = sbr.rel (%p704) target = $region64
        $region63: #{tpu_custom_call.1} parent=55 // pred_region
          %s707 = sand.u32 %s187, 1
          %s708 = scalar_lea.sflag [#allocation6], %s707
          %s709 = sand.u32 %s187, 1
          %s710 = smul.addr %s709, 4
          %s711 = scalar_lea.vmem [#allocation5], %s710
          %712 = dma.done %s708, 64
        $region64: #{tpu_custom_call.1} parent=55 // pred_fallthru
          _
      $region56: #{tpu_custom_call.1} parent=5 // pred_fallthru
        _
    $region6: #{tpu_custom_call.1} parent=1 // loop_footer
      %s23 = sadd.s32 1, %s19
    $region7: #{tpu_custom_call.1} parent=1 // loop_footer_branch
      %18 = sbr.rel target = $region3
    $region8: #{tpu_custom_call.1} parent=1 // loop_exit
      _
    %713 = vsyncpa [#allocation4], 1
    %s714 = scalar_lea.sflag [#allocation4], 1
    %715 = vsyncpa %s714, 1
    %716 = vsyncpa [#allocation6], 1
    %s717 = scalar_lea.sflag [#allocation6], 1
    %718 = vsyncpa %s717, 1

</llo_original>
